<compile_context>
chip_gen: v5e
topology: v5e:2x2
jax: 0.10.0
libtpu: 0.0.40
codegen_flags: <defaults>
</compile_context>

<pallas_src>
from functools import partial

import jax
import jax.numpy as jnp
from jax.experimental import pallas as pl
from jax.experimental.pallas import tpu as pltpu

_LANE = 128
_ACC_ROWS = 128           # accumulator / inner-chunk height (16 f32 vregs)


def _pick_block_bytes():
    """Per-generation input block size (bytes)."""
    try:
        kind = jax.devices()[0].device_kind.lower()
    except Exception:  # pragma: no cover - defensive
        kind = ""
    if "v7" in kind:
        return 8 << 20    # v7x: ~3.2 TB/s, need bigger blocks to hide step overhead
    return 4 << 20        # v5e / v6e (and safe default)


def _choose_tiling(m_rows, itemsize, block_bytes):
    """Rows per block (tm) and rows per inner accumulation chunk (acc_rows)."""
    tm_target = max(8, block_bytes // (_LANE * itemsize))
    tm = min(tm_target, m_rows)
    if tm >= _ACC_ROWS:
        acc_rows = _ACC_ROWS
        tm = (tm // acc_rows) * acc_rows
    else:
        tm = max(8, (tm // 8) * 8)
        acc_rows = tm
    return tm, acc_rows


def _mean_kernel(x_ref, o_ref, acc_ref, *, m_rows, tm, acc_rows,
                 steps_per_core, any_ragged, lane):
    c = pl.program_id(0)                    # core-split index ("parallel")
    j = pl.program_id(1)                    # reduction step   ("arbitrary")
    blk = c * steps_per_core + j            # logical row-block index

    @pl.when(j == 0)
    def _():
        acc_ref[...] = jnp.zeros_like(acc_ref)

    n_inner = tm // acc_rows

    def accumulate(masked):
        def body(s, carry):
            start = pl.multiple_of(s * acc_rows, acc_rows)
            sl = x_ref[pl.ds(start, acc_rows), :].astype(jnp.float32)
            if masked:
                rows = (jax.lax.broadcasted_iota(jnp.int32, (acc_rows, lane), 0)
                        + blk * tm + start)
                sl = jnp.where(rows < m_rows, sl, 0.0)
            return carry + sl               # acc_rows/8 independent vreg add chains
        part = jax.lax.fori_loop(0, n_inner, body,
                                 jnp.zeros((acc_rows, lane), jnp.float32),
                                 unroll=(n_inner <= 4))
        acc_ref[...] += part

    if any_ragged:
        # Only blocks overlapping (or past) the array edge pay for the mask.
        is_ragged = (blk + 1) * tm > m_rows

        @pl.when(is_ragged)
        def _():
            accumulate(True)

        @pl.when(jnp.logical_not(is_ragged))
        def _():
            accumulate(False)
    else:
        accumulate(False)

    @pl.when(j == pl.num_programs(1) - 1)
    def _():
        o_ref[...] = acc_ref[...]           # dump per-core partial-sum slab


def pallas_mean(x, *, block_bytes=None):
    """torch.mean(x) over all elements, computed in a Pallas TPU kernel."""
    n = x.size
    dtype = x.dtype
    itemsize = jnp.dtype(dtype).itemsize
    lane = _LANE
    sub = {4: 8, 2: 16, 1: 32}.get(itemsize, 8)
    if block_bytes is None:
        block_bytes = _pick_block_bytes()

    flat = x.reshape(-1)                    # free for a contiguous array
    tail_sum = jnp.float32(0.0)
    if n % lane == 0 and n > 0:
        x2d = flat.reshape(-1, lane)        # zero-copy lane-dense view
    elif n < lane * sub:
        # Tiny input: pad to one minimal tile (negligible copy; zeros are
        # sum-neutral since we divide by the true n).
        x2d = jnp.pad(flat, (0, lane * sub - n)).reshape(-1, lane)
    else:
        # Rare (n not a multiple of 128): kernel reduces the lane-aligned
        # prefix, the <128-element tail is summed outside.
        n_main = (n // lane) * lane
        tail_sum = jnp.sum(flat[n_main:].astype(jnp.float32))
        x2d = jax.lax.slice(flat, (0,), (n_main,)).reshape(-1, lane)

    m_rows = x2d.shape[0]
    tm, acc_rows = _choose_tiling(m_rows, itemsize, block_bytes)
    total_blocks = pl.cdiv(m_rows, tm)
    n_split = 2 if total_blocks >= 2 else 1   # 2 TCs on v7x; harmless elsewhere
    steps = pl.cdiv(total_blocks, n_split)
    any_ragged = (n_split * steps * tm) != m_rows

    def x_index_map(c, j):
        blk = c * steps + j
        # Clamp so dummy/overflow blocks re-read a valid block (they are fully
        # masked in the kernel and contribute zero).
        return (jnp.minimum(blk, total_blocks - 1), 0)

    vmem_limit = int(2 * tm * lane * itemsize                     # 2x input block
                     + 4 * acc_rows * lane * (1 + 2 * n_split)    # acc + out bufs
                     + (8 << 20))                                 # headroom

    parts = pl.pallas_call(
        partial(_mean_kernel, m_rows=m_rows, tm=tm, acc_rows=acc_rows,
                steps_per_core=steps, any_ragged=any_ragged, lane=lane),
        out_shape=jax.ShapeDtypeStruct((n_split * acc_rows, lane), jnp.float32),
        grid_spec=pltpu.PrefetchScalarGridSpec(
            num_scalar_prefetch=0,
            grid=(n_split, steps),
            in_specs=[pl.BlockSpec((tm, lane), x_index_map)],
            out_specs=pl.BlockSpec((acc_rows, lane), lambda c, j: (c, 0)),
            scratch_shapes=[pltpu.VMEM((acc_rows, lane), jnp.float32)],
        ),
        compiler_params=pltpu.CompilerParams(
            dimension_semantics=("parallel", "arbitrary"),
            vmem_limit_bytes=vmem_limit,
        ),
    )(x2d)

    total = jnp.sum(parts, dtype=jnp.float32) + tail_sum
    return (total * (1.0 / n)).astype(dtype)


if __name__ == "__main__":
    key = jax.random.PRNGKey(0)
    # Shapes consistent with a ResNet-style feature map: [N, C, H, W]
    x = jax.random.normal(key, (2, 4, 16, 16), dtype=jnp.float32)

    result = jax.block_until_ready(pallas_mean(x))
    expected = jnp.mean(x)

    assert jnp.allclose(result, expected, atol=1e-5, rtol=1e-5), (result, expected)
    print("KERNEL_OK")
</pallas_src>

<mosaic_0001>
module attributes {stable_mosaic.version = 11 : i64} {
  func.func @_mean_kernel(%arg0: i32, %arg1: i32, %arg2: memref<16x128xf32, #tpu.memory_space<vmem>>, %arg3: memref<16x128xf32, #tpu.memory_space<vmem>>, %arg4: memref<16x128xf32, #tpu.memory_space<vmem>>) attributes {dimension_semantics = [#tpu.dimension_semantics<parallel>, #tpu.dimension_semantics<arbitrary>], iteration_bounds = array<i64: 1, 1>, scalar_prefetch = 0 : i64, scratch_operands = 1 : i64, tpu.core_type = #tpu.core_type<tc>, window_params = [{transform_indices = @transform_0, window_bounds = array<i64: 16, 128>}, {transform_indices = @transform_1, window_bounds = array<i64: 16, 128>}]} {
    %c0_i32 = arith.constant 0 : i32
    %0 = arith.cmpi eq, %arg1, %c0_i32 : i32
    %1 = arith.extui %0 : i1 to i32
    %c0_i32_0 = arith.constant 0 : i32
    %2 = arith.cmpi ne, %1, %c0_i32_0 : i32
    scf.if %2 {
      %cst_8 = arith.constant 0.000000e+00 : f32
      %15 = vector.broadcast %cst_8 : f32 to vector<16x128xf32>
      %c0_9 = arith.constant 0 : index
      %c0_10 = arith.constant 0 : index
      %16 = vector.load %arg4[%c0_9, %c0_10] : memref<16x128xf32, #tpu.memory_space<vmem>>, vector<16x128xf32>
      tpu.vector_store %arg4[%c0_9, %c0_10], %15 {strides = array<i32>} : memref<16x128xf32, #tpu.memory_space<vmem>>, vector<16x128xf32>,
    } else {
    }
    %cst = arith.constant 0.000000e+00 : f32
    %3 = vector.broadcast %cst : f32 to vector<16x128xf32>
    %c0_i32_1 = arith.constant 0 : i32
    %c16_i32 = arith.constant 16 : i32
    %4 = arith.muli %c0_i32_1, %c16_i32 : i32
    %5 = tpu.assume_multiple %4, 16 : i32
    %6 = arith.index_cast %5 : i32 to index
    %c0 = arith.constant 0 : index
    %7 = vector.load %arg2[%6, %c0] : memref<16x128xf32, #tpu.memory_space<vmem>>, vector<16x128xf32>
    %8 = arith.addf %3, %7 : vector<16x128xf32>
    %c1_i32 = arith.constant 1 : i32
    %c0_2 = arith.constant 0 : index
    %c0_3 = arith.constant 0 : index
    %9 = vector.load %arg4[%c0_2, %c0_3] : memref<16x128xf32, #tpu.memory_space<vmem>>, vector<16x128xf32>
    %10 = arith.addf %9, %8 : vector<16x128xf32>
    %c0_4 = arith.constant 0 : index
    %c0_5 = arith.constant 0 : index
    %11 = vector.load %arg4[%c0_4, %c0_5] : memref<16x128xf32, #tpu.memory_space<vmem>>, vector<16x128xf32>
    tpu.vector_store %arg4[%c0_4, %c0_5], %10 {strides = array<i32>} : memref<16x128xf32, #tpu.memory_space<vmem>>, vector<16x128xf32>,
    %c0_i32_6 = arith.constant 0 : i32
    %12 = arith.cmpi eq, %arg1, %c0_i32_6 : i32
    %13 = arith.extui %12 : i1 to i32
    %c0_i32_7 = arith.constant 0 : i32
    %14 = arith.cmpi ne, %13, %c0_i32_7 : i32
    scf.if %14 {
      %c0_8 = arith.constant 0 : index
      %c0_9 = arith.constant 0 : index
      %15 = vector.load %arg4[%c0_8, %c0_9] : memref<16x128xf32, #tpu.memory_space<vmem>>, vector<16x128xf32>
      %c0_10 = arith.constant 0 : index
      %c0_11 = arith.constant 0 : index
      %16 = vector.load %arg3[%c0_10, %c0_11] : memref<16x128xf32, #tpu.memory_space<vmem>>, vector<16x128xf32>
      tpu.vector_store %arg3[%c0_10, %c0_11], %15 {strides = array<i32>} : memref<16x128xf32, #tpu.memory_space<vmem>>, vector<16x128xf32>,
    } else {
    }
    return
  }
  func.func @transform_0(%arg0: i32, %arg1: i32) -> (i32, i32) {
    %c1_i32 = arith.constant 1 : i32
    %0 = arith.muli %arg0, %c1_i32 : i32
    %1 = arith.addi %0, %arg1 : i32
    %c0_i32 = arith.constant 0 : i32
    %2 = arith.minsi %1, %c0_i32 : i32
    %c0_i32_0 = arith.constant 0 : i32
    %c0_i32_1 = arith.constant 0 : i32
    return %2, %c0_i32_0 : i32, i32
  }
  func.func @transform_1(%arg0: i32, %arg1: i32) -> (i32, i32) {
    %c0_i32 = arith.constant 0 : i32
    %c0_i32_0 = arith.constant 0 : i32
    return %arg0, %c0_i32 : i32, i32
  }
}

</mosaic_0001>

<llo_original>
// kernel: tpu_custom_call.1
$region0: #{tpu_custom_call.1}
  #allocation0 [shape = 'u32[]', space=smem, size = 0x4, offset = 0x4, fixed_abs, tag = 'smem constant byte address 0x4 - core index']
  #allocation1 [shape = 'u32[72,128]{1,0:T(1,128)}', space=vmem, size = 0x9000, scoped, tag = 'internal scratch']
  #allocation2 [shape = 'f32[16,128]{1,0:T(8,128)}', space=vmem, size = 0x2000, scoped, tag = 'scratch operand']
  %s0 = inlined_call_operand.hbm [shape: f32[16,128], index: 0, kind: input, shape index: {}]
  %s1 = inlined_call_operand.hbm [shape: f32[16,128], index: 1, kind: output, shape index: {}]
  %s2 = sld [smem:[#allocation0]]
  $region26: #{tpu_custom_call.1} parent=0
    _
  %s4 = ssub.s32 1, %s2
  %s5 = scalar_select 0, %s4, %s2
  $region1: #{tpu_custom_call.1} parent=0
    #allocation3 [shape = 'u8[8192]{0}', space=vmem, size = 0x2000, scoped, tag = 'input window, operand 0, single buffered']
    #allocation4 [shape = 's32[1]{0}', space=sflag, size = 0x4, scoped, tag = 'scoped memory for tpu_custom_call.1']
    #allocation5 [shape = 's32[1]{0}', space=sflag, size = 0x4, scoped, tag = 'scoped memory for tpu_custom_call.1']
    #allocation6 [shape = 'u8[8192]{0}', space=vmem, size = 0x2000, scoped, tag = 'output window, operand 0, single buffered']
    %6 = vsyncpa [#allocation4], 0
    %7 = vsyncpa [#allocation5], 0
    // Predicated region
    $region2: #{tpu_custom_call.1} parent=1 // pred_check
      _
    $region3: #{tpu_custom_call.1} parent=1 // pred_check_branch
      %9 = sbr.rel (0) target = $region5
    $region4: #{tpu_custom_call.1} parent=1 // pred_region
      %s10 = sadd.s32 0, 0
      %p11 = scmp.lt.s32.totalorder %s10, 0
      %s12 = scalar_select %p11, %s10, 0
      %s13 = smul.u32 2, %s12
      %15 = vsyncadd [#allocation4], 0
      %s16 = smul.addr %s13, 8
      %s17 = scalar_lea.hbm %s0, %s16
      %s18 = sshll.u32 %s17, 4
      %s19 = int_to_ptr.hbm [resolvable:$true] %s18
      %s20 = sshll.u32 [#allocation3], 4
      %s21 = int_to_ptr.vmem [resolvable:$true] %s20
      %26 = dma.hbm_to_vmem [thread:$0]  %s19, 256, %s21, [#allocation4], 128, 128, 8
    $region5: #{tpu_custom_call.1} parent=1 // pred_fallthru
      _
    // Predicated region
    $region6: #{tpu_custom_call.1} parent=1 // pred_check
      _
    $region7: #{tpu_custom_call.1} parent=1 // pred_check_branch
      %28 = sbr.rel (0) target = $region9
    $region8: #{tpu_custom_call.1} parent=1 // pred_region
      %30 = dma.done [#allocation4], 256
    $region9: #{tpu_custom_call.1} parent=1 // pred_fallthru
      _
    %s31 = sadd.s32 0, 0
    %p32 = scmp.lt.s32.totalorder %s31, 0
    %s33 = scalar_select %p32, %s31, 0
    %s34 = smul.u32 2, %s33
    %p35 = scmp.eq.s32.totalorder 0, 0
    // Predicated region
    $region10: #{tpu_custom_call.1} parent=1 // pred_check
      %p36 = pneg %p35
    $region11: #{tpu_custom_call.1} parent=1 // pred_check_branch
      %38 = sbr.rel (%p36) target = $region13
    $region12: #{tpu_custom_call.1} parent=1 // pred_region
      %39 = vst [vmem:[#allocation2] sm:$0xff] 0.0
      %40 = vst [vmem:[#allocation2 + $0x8] sm:$0xff] 0.0
    $region13: #{tpu_custom_call.1} parent=1 // pred_fallthru
      _
    %v41 = vld [vmem:[#allocation3] sm:$0xff]
    %v42 = vld [vmem:[#allocation3 + $0x8] sm:$0xff]
    %v43 = vadd.f32 %v41, 0.0
    %v44 = vadd.f32 %v42, 0.0
    %v45 = vld [vmem:[#allocation2] sm:$0xff]
    %v46 = vld [vmem:[#allocation2 + $0x8] sm:$0xff]
    %v47 = vadd.f32 %v45, %v43
    %v48 = vadd.f32 %v46, %v44
    %49 = vst [vmem:[#allocation2] sm:$0xff] %v47
    %50 = vst [vmem:[#allocation2 + $0x8] sm:$0xff] %v48
    // Predicated region
    $region14: #{tpu_custom_call.1} parent=1 // pred_check
      %p51 = pneg %p35
    $region15: #{tpu_custom_call.1} parent=1 // pred_check_branch
      %53 = sbr.rel (%p51) target = $region17
    $region16: #{tpu_custom_call.1} parent=1 // pred_region
      %v54 = vld [vmem:[#allocation2] sm:$0xff]
      %v55 = vld [vmem:[#allocation2 + $0x8] sm:$0xff]
      %56 = vst [vmem:[#allocation6] sm:$0xff] %v54
      %57 = vst [vmem:[#allocation6 + $0x8] sm:$0xff] %v55
    $region17: #{tpu_custom_call.1} parent=1 // pred_fallthru
      _
    // Predicated region
    $region18: #{tpu_custom_call.1} parent=1 // pred_check
      _
    $region19: #{tpu_custom_call.1} parent=1 // pred_check_branch
      %59 = sbr.rel (0) target = $region21
    $region20: #{tpu_custom_call.1} parent=1 // pred_region
      %61 = vsyncadd [#allocation5], 0
      %s62 = sshll.u32 [#allocation6], 4
      %s63 = int_to_ptr.vmem [resolvable:$true] %s62
      %s64 = sshll.u32 %s1, 4
      %s65 = int_to_ptr.hbm [resolvable:$true] %s64
      %70 = dma.vmem_to_hbm [thread:$0]  %s63, 256, %s65, [#allocation5], 128, 128, 8
    $region21: #{tpu_custom_call.1} parent=1 // pred_fallthru
      _
    // Predicated region
    $region22: #{tpu_custom_call.1} parent=1 // pred_check
      _
    $region23: #{tpu_custom_call.1} parent=1 // pred_check_branch
      %72 = sbr.rel (0) target = $region25
    $region24: #{tpu_custom_call.1} parent=1 // pred_region
      %74 = dma.done [#allocation5], 256
    $region25: #{tpu_custom_call.1} parent=1 // pred_fallthru
      _
    %75 = vsyncpa [#allocation4], 1
    %76 = vsyncpa [#allocation5], 1

</llo_original>
